<compile_context>
chip_gen: v6e
topology: v6e:2x2x1
jax: 0.10.0
libtpu: 0.0.40
codegen_flags: <defaults>
</compile_context>

<pallas_src>
import functools

import jax
import jax.numpy as jnp
from jax.experimental import pallas as pl
from jax.experimental.pallas import tpu as pltpu  # noqa: F401

# ----------------------------- model dims (small) -----------------------------
VOCAB = 50
EMBED = 16      # embedding_weights.shape[1]
HIDDEN = 32     # hidden_size (4H = 128 = one lane slab)
ADD_FEAT = 8    # add_feature_size
BATCH = 2
SEQ = 8
BPAD = 8        # batch padded to one full sublane group


# ------------------------------ Pallas kernel --------------------------------
def lstm_kernel(x_ref, w_ref, consts_ref, out_ref, *, T, BP, E, H, A):
    # x_ref:      (T*BP, E)  time-major embedded input, batch zero-padded to BP
    # w_ref:      (E+H, 4H)  rows [0:E)=W_ih^T, [E:E+H)=W_hh^T, gate cols [i|f|o|g]
    # consts_ref: (16, 4H)   row0 = b_ih+b_hh; row1 = [w_lin_h | w_lin_a | b_lin];
    #                        rows 8:8+BP, lanes 0:A = add_features (padded)
    # out_ref:    (BP, 4H)   sigmoid(logit) broadcast across lanes
    wih = w_ref[0:E, :]
    whh = w_ref[E:E + H, :]
    bias = consts_ref[0:1, :]

    # Input projection for ALL timesteps in one MXU matmul, off the serial chain.
    xp = (jnp.dot(x_ref[...], wih, preferred_element_type=jnp.float32)
          + bias)                                              # (T*BP, 4H)

    h = jnp.zeros((BP, H), jnp.float32)
    c = jnp.zeros((BP, H), jnp.float32)

    # Fully-unrolled static recurrence; every per-step slab is a whole (8,128) vreg.
    for t in range(T):
        gates = xp[t * BP:(t + 1) * BP, :] + jnp.dot(
            h, whh, preferred_element_type=jnp.float32)        # (BP, 4H)
        sig = jax.nn.sigmoid(gates)                            # full-vreg EUP
        tnh = jnp.tanh(gates)                                  # full-vreg EUP
        i_g = sig[:, 0 * H:1 * H]
        f_g = sig[:, 1 * H:2 * H]
        o_g = sig[:, 2 * H:3 * H]
        g_g = tnh[:, 3 * H:4 * H]
        c = f_g * c + i_g * g_g
        h = o_g * jnp.tanh(c)

    # Final Linear on concat(h_last, add): VPU broadcast-multiply + lane reduce
    # (avoids 1-lane-wide MXU matmuls).
    w_h = consts_ref[1:2, 0:H]                                 # (1, H)
    w_a = consts_ref[1:2, H:H + A]                             # (1, A)
    b_l = consts_ref[1:2, H + A:H + A + 1]                     # (1, 1)
    add = consts_ref[8:8 + BP, 0:A]                            # (BP, A)
    logit = (jnp.sum(h * w_h, axis=-1, keepdims=True)
             + jnp.sum(add * w_a, axis=-1, keepdims=True)
             + b_l)                                            # (BP, 1)
    out_ref[...] = jnp.broadcast_to(jax.nn.sigmoid(logit), out_ref.shape)


# ------------------------------ wrapper ---------------------------------------
def lstm_combined_forward(text, add_features, params):
    """text: (B, T) int32 token ids; add_features: (B, A) float32."""
    B, T = text.shape
    E = params["embedding"].shape[1]
    H = params["w_hh"].shape[1]
    A = add_features.shape[1]
    BP = BPAD
    G4 = 4 * H

    # ---- glue (not the hot path): embedding gather + layout packing ----------
    embedded = params["embedding"][text]                       # (B, T, E)
    x_tm = jnp.transpose(embedded, (1, 0, 2))                  # (T, B, E) time-major
    x_tm = jnp.pad(x_tm, ((0, 0), (0, BP - B), (0, 0)))        # (T, BP, E)
    x_flat = x_tm.reshape(T * BP, E)

    def regroup(w):   # PyTorch gate order [i, f, g, o] -> [i, f, o, g]
        return jnp.concatenate([w[:2 * H], w[3 * H:], w[2 * H:3 * H]], axis=0)

    w_cat = jnp.concatenate([regroup(params["w_ih"]).T,        # (E, 4H)
                             regroup(params["w_hh"]).T],       # (H, 4H)
                            axis=0).astype(jnp.float32)        # (E+H, 4H)

    consts = jnp.zeros((16, G4), jnp.float32)
    consts = consts.at[0, :].set(regroup(params["b_ih"] + params["b_hh"]))
    consts = consts.at[1, 0:H].set(params["w_lin"][0, :H])
    consts = consts.at[1, H:H + A].set(params["w_lin"][0, H:])
    consts = consts.at[1, H + A].set(params["b_lin"][0])
    consts = consts.at[8:8 + B, 0:A].set(add_features)

    kernel = functools.partial(lstm_kernel, T=T, BP=BP, E=E, H=H, A=A)
    full = lambda: (0, 0)    # no grid: whole-array blocks, single invocation

    out = pl.pallas_call(
        kernel,
        out_shape=jax.ShapeDtypeStruct((BP, G4), jnp.float32),
        in_specs=[
            pl.BlockSpec((T * BP, E), full),
            pl.BlockSpec((E + H, G4), full),
            pl.BlockSpec((16, G4), full),
        ],
        out_specs=pl.BlockSpec((BP, G4), full),
    )(x_flat, w_cat, consts)

    return out[:B, :1]                                         # (B, 1)


# --------------------------- pure-JAX reference -------------------------------
def reference_forward(text, add_features, params):
    emb = params["embedding"][text]                            # (B, T, E)
    B, T, E = emb.shape
    H = params["w_hh"].shape[1]
    h = jnp.zeros((B, H), jnp.float32)
    c = jnp.zeros((B, H), jnp.float32)
    for t in range(T):
        x = emb[:, t, :]
        gates = (x @ params["w_ih"].T + params["b_ih"]
                 + h @ params["w_hh"].T + params["b_hh"])
        i_g = jax.nn.sigmoid(gates[:, 0 * H:1 * H])
        f_g = jax.nn.sigmoid(gates[:, 1 * H:2 * H])
        g_g = jnp.tanh(gates[:, 2 * H:3 * H])
        o_g = jax.nn.sigmoid(gates[:, 3 * H:4 * H])
        c = f_g * c + i_g * g_g
        h = o_g * jnp.tanh(c)
    x = jnp.concatenate([h, add_features], axis=1)
    return jax.nn.sigmoid(x @ params["w_lin"].T + params["b_lin"])


# ----------------------------------- main -------------------------------------
if __name__ == "__main__":
    key = jax.random.PRNGKey(0)
    keys = jax.random.split(key, 8)

    params = {
        "embedding": jax.random.normal(keys[0], (VOCAB, EMBED), jnp.float32) * 0.1,
        "w_ih": jax.random.normal(keys[1], (4 * HIDDEN, EMBED), jnp.float32) * 0.1,
        "w_hh": jax.random.normal(keys[2], (4 * HIDDEN, HIDDEN), jnp.float32) * 0.1,
        "b_ih": jax.random.normal(keys[3], (4 * HIDDEN,), jnp.float32) * 0.1,
        "b_hh": jax.random.normal(keys[4], (4 * HIDDEN,), jnp.float32) * 0.1,
        "w_lin": jax.random.normal(keys[5], (1, HIDDEN + ADD_FEAT), jnp.float32) * 0.1,
        "b_lin": jax.random.normal(keys[6], (1,), jnp.float32) * 0.1,
    }

    text = jax.random.randint(keys[7], (BATCH, SEQ), 0, VOCAB, jnp.int32)
    add_features = jax.random.normal(jax.random.PRNGKey(1),
                                     (BATCH, ADD_FEAT), jnp.float32)

    out = lstm_combined_forward(text, add_features, params)
    out = jax.block_until_ready(out)

    ref = reference_forward(text, add_features, params)
    assert out.shape == (BATCH, 1)
    assert jnp.allclose(out, ref, atol=1e-4, rtol=1e-4), (out, ref)

    print("KERNEL_OK")
</pallas_src>

<mosaic_0001>
module attributes {stable_mosaic.version = 11 : i64} {
  func.func @lstm_kernel(%arg0: memref<64x16xf32, #tpu.memory_space<vmem>>, %arg1: memref<48x128xf32, #tpu.memory_space<vmem>>, %arg2: memref<16x128xf32, #tpu.memory_space<vmem>>, %arg3: memref<8x128xf32, #tpu.memory_space<vmem>>) attributes {dimension_semantics = [], scalar_prefetch = 0 : i64, scratch_operands = 0 : i64, tpu.core_type = #tpu.core_type<tc>} {
    %c0 = arith.constant 0 : index
    %c0_0 = arith.constant 0 : index
    %0 = vector.load %arg1[%c0, %c0_0] : memref<48x128xf32, #tpu.memory_space<vmem>>, vector<16x128xf32>
    %c16 = arith.constant 16 : index
    %c0_1 = arith.constant 0 : index
    %1 = vector.load %arg1[%c16, %c0_1] : memref<48x128xf32, #tpu.memory_space<vmem>>, vector<32x128xf32>
    %c0_2 = arith.constant 0 : index
    %c0_3 = arith.constant 0 : index
    %2 = vector.load %arg2[%c0_2, %c0_3] : memref<16x128xf32, #tpu.memory_space<vmem>>, vector<1x128xf32>
    %c0_4 = arith.constant 0 : index
    %c0_5 = arith.constant 0 : index
    %3 = vector.load %arg0[%c0_4, %c0_5] : memref<64x16xf32, #tpu.memory_space<vmem>>, vector<64x16xf32>
    %cst = arith.constant dense<0.000000e+00> : vector<64x128xf32>
    %4 = tpu.matmul %3, %0, %cst {dimension_numbers = #tpu.dot_dimension_numbers<[1], [0], [0], [1], [0, 0, 1, 1], [], []>} : vector<64x16xf32>, vector<16x128xf32>, vector<64x128xf32> -> vector<64x128xf32>
    %5 = vector.broadcast %2 : vector<1x128xf32> to vector<64x128xf32>
    %6 = arith.addf %4, %5 : vector<64x128xf32>
    %cst_6 = arith.constant 0.000000e+00 : f32
    %7 = vector.broadcast %cst_6 : f32 to vector<8x32xf32>
    %cst_7 = arith.constant 0.000000e+00 : f32
    %8 = vector.broadcast %cst_7 : f32 to vector<8x32xf32>
    %9 = vector.extract_strided_slice %6 {offsets = [0, 0], sizes = [8, 128], strides = [1, 1]} : vector<64x128xf32> to vector<8x128xf32>
    %cst_8 = arith.constant dense<0.000000e+00> : vector<8x128xf32>
    %10 = tpu.matmul %7, %1, %cst_8 {dimension_numbers = #tpu.dot_dimension_numbers<[1], [0], [0], [1], [0, 0, 1, 1], [], []>} : vector<8x32xf32>, vector<32x128xf32>, vector<8x128xf32> -> vector<8x128xf32>
    %11 = arith.addf %9, %10 : vector<8x128xf32>
    %12 = arith.negf %11 : vector<8x128xf32>
    %13 = math.exp %12 : vector<8x128xf32>
    %cst_9 = arith.constant 1.000000e+00 : f32
    %14 = vector.broadcast %cst_9 : f32 to vector<8x128xf32>
    %15 = arith.addf %14, %13 : vector<8x128xf32>
    %16 = arith.divf %14, %15 : vector<8x128xf32>
    %17 = math.tanh %11 : vector<8x128xf32>
    %18 = vector.extract_strided_slice %16 {offsets = [0, 0], sizes = [8, 32], strides = [1, 1]} : vector<8x128xf32> to vector<8x32xf32>
    %19 = vector.extract_strided_slice %16 {offsets = [0, 32], sizes = [8, 32], strides = [1, 1]} : vector<8x128xf32> to vector<8x32xf32>
    %20 = vector.extract_strided_slice %16 {offsets = [0, 64], sizes = [8, 32], strides = [1, 1]} : vector<8x128xf32> to vector<8x32xf32>
    %21 = vector.extract_strided_slice %17 {offsets = [0, 96], sizes = [8, 32], strides = [1, 1]} : vector<8x128xf32> to vector<8x32xf32>
    %22 = arith.mulf %19, %8 : vector<8x32xf32>
    %23 = arith.mulf %18, %21 : vector<8x32xf32>
    %24 = arith.addf %22, %23 : vector<8x32xf32>
    %25 = math.tanh %24 : vector<8x32xf32>
    %26 = arith.mulf %20, %25 : vector<8x32xf32>
    %27 = vector.extract_strided_slice %6 {offsets = [8, 0], sizes = [8, 128], strides = [1, 1]} : vector<64x128xf32> to vector<8x128xf32>
    %cst_10 = arith.constant dense<0.000000e+00> : vector<8x128xf32>
    %28 = tpu.matmul %26, %1, %cst_10 {dimension_numbers = #tpu.dot_dimension_numbers<[1], [0], [0], [1], [0, 0, 1, 1], [], []>} : vector<8x32xf32>, vector<32x128xf32>, vector<8x128xf32> -> vector<8x128xf32>
    %29 = arith.addf %27, %28 : vector<8x128xf32>
    %30 = arith.negf %29 : vector<8x128xf32>
    %31 = math.exp %30 : vector<8x128xf32>
    %cst_11 = arith.constant 1.000000e+00 : f32
    %32 = vector.broadcast %cst_11 : f32 to vector<8x128xf32>
    %33 = arith.addf %32, %31 : vector<8x128xf32>
    %34 = arith.divf %32, %33 : vector<8x128xf32>
    %35 = math.tanh %29 : vector<8x128xf32>
    %36 = vector.extract_strided_slice %34 {offsets = [0, 0], sizes = [8, 32], strides = [1, 1]} : vector<8x128xf32> to vector<8x32xf32>
    %37 = vector.extract_strided_slice %34 {offsets = [0, 32], sizes = [8, 32], strides = [1, 1]} : vector<8x128xf32> to vector<8x32xf32>
    %38 = vector.extract_strided_slice %34 {offsets = [0, 64], sizes = [8, 32], strides = [1, 1]} : vector<8x128xf32> to vector<8x32xf32>
    %39 = vector.extract_strided_slice %35 {offsets = [0, 96], sizes = [8, 32], strides = [1, 1]} : vector<8x128xf32> to vector<8x32xf32>
    %40 = arith.mulf %37, %24 : vector<8x32xf32>
    %41 = arith.mulf %36, %39 : vector<8x32xf32>
    %42 = arith.addf %40, %41 : vector<8x32xf32>
    %43 = math.tanh %42 : vector<8x32xf32>
    %44 = arith.mulf %38, %43 : vector<8x32xf32>
    %45 = vector.extract_strided_slice %6 {offsets = [16, 0], sizes = [8, 128], strides = [1, 1]} : vector<64x128xf32> to vector<8x128xf32>
    %cst_12 = arith.constant dense<0.000000e+00> : vector<8x128xf32>
    %46 = tpu.matmul %44, %1, %cst_12 {dimension_numbers = #tpu.dot_dimension_numbers<[1], [0], [0], [1], [0, 0, 1, 1], [], []>} : vector<8x32xf32>, vector<32x128xf32>, vector<8x128xf32> -> vector<8x128xf32>
    %47 = arith.addf %45, %46 : vector<8x128xf32>
    %48 = arith.negf %47 : vector<8x128xf32>
    %49 = math.exp %48 : vector<8x128xf32>
    %cst_13 = arith.constant 1.000000e+00 : f32
    %50 = vector.broadcast %cst_13 : f32 to vector<8x128xf32>
    %51 = arith.addf %50, %49 : vector<8x128xf32>
    %52 = arith.divf %50, %51 : vector<8x128xf32>
    %53 = math.tanh %47 : vector<8x128xf32>
    %54 = vector.extract_strided_slice %52 {offsets = [0, 0], sizes = [8, 32], strides = [1, 1]} : vector<8x128xf32> to vector<8x32xf32>
    %55 = vector.extract_strided_slice %52 {offsets = [0, 32], sizes = [8, 32], strides = [1, 1]} : vector<8x128xf32> to vector<8x32xf32>
    %56 = vector.extract_strided_slice %52 {offsets = [0, 64], sizes = [8, 32], strides = [1, 1]} : vector<8x128xf32> to vector<8x32xf32>
    %57 = vector.extract_strided_slice %53 {offsets = [0, 96], sizes = [8, 32], strides = [1, 1]} : vector<8x128xf32> to vector<8x32xf32>
    %58 = arith.mulf %55, %42 : vector<8x32xf32>
    %59 = arith.mulf %54, %57 : vector<8x32xf32>
    %60 = arith.addf %58, %59 : vector<8x32xf32>
    %61 = math.tanh %60 : vector<8x32xf32>
    %62 = arith.mulf %56, %61 : vector<8x32xf32>
    %63 = vector.extract_strided_slice %6 {offsets = [24, 0], sizes = [8, 128], strides = [1, 1]} : vector<64x128xf32> to vector<8x128xf32>
    %cst_14 = arith.constant dense<0.000000e+00> : vector<8x128xf32>
    %64 = tpu.matmul %62, %1, %cst_14 {dimension_numbers = #tpu.dot_dimension_numbers<[1], [0], [0], [1], [0, 0, 1, 1], [], []>} : vector<8x32xf32>, vector<32x128xf32>, vector<8x128xf32> -> vector<8x128xf32>
    %65 = arith.addf %63, %64 : vector<8x128xf32>
    %66 = arith.negf %65 : vector<8x128xf32>
    %67 = math.exp %66 : vector<8x128xf32>
    %cst_15 = arith.constant 1.000000e+00 : f32
    %68 = vector.broadcast %cst_15 : f32 to vector<8x128xf32>
    %69 = arith.addf %68, %67 : vector<8x128xf32>
    %70 = arith.divf %68, %69 : vector<8x128xf32>
    %71 = math.tanh %65 : vector<8x128xf32>
    %72 = vector.extract_strided_slice %70 {offsets = [0, 0], sizes = [8, 32], strides = [1, 1]} : vector<8x128xf32> to vector<8x32xf32>
    %73 = vector.extract_strided_slice %70 {offsets = [0, 32], sizes = [8, 32], strides = [1, 1]} : vector<8x128xf32> to vector<8x32xf32>
    %74 = vector.extract_strided_slice %70 {offsets = [0, 64], sizes = [8, 32], strides = [1, 1]} : vector<8x128xf32> to vector<8x32xf32>
    %75 = vector.extract_strided_slice %71 {offsets = [0, 96], sizes = [8, 32], strides = [1, 1]} : vector<8x128xf32> to vector<8x32xf32>
    %76 = arith.mulf %73, %60 : vector<8x32xf32>
    %77 = arith.mulf %72, %75 : vector<8x32xf32>
    %78 = arith.addf %76, %77 : vector<8x32xf32>
    %79 = math.tanh %78 : vector<8x32xf32>
    %80 = arith.mulf %74, %79 : vector<8x32xf32>
    %81 = vector.extract_strided_slice %6 {offsets = [32, 0], sizes = [8, 128], strides = [1, 1]} : vector<64x128xf32> to vector<8x128xf32>
    %cst_16 = arith.constant dense<0.000000e+00> : vector<8x128xf32>
    %82 = tpu.matmul %80, %1, %cst_16 {dimension_numbers = #tpu.dot_dimension_numbers<[1], [0], [0], [1], [0, 0, 1, 1], [], []>} : vector<8x32xf32>, vector<32x128xf32>, vector<8x128xf32> -> vector<8x128xf32>
    %83 = arith.addf %81, %82 : vector<8x128xf32>
    %84 = arith.negf %83 : vector<8x128xf32>
    %85 = math.exp %84 : vector<8x128xf32>
    %cst_17 = arith.constant 1.000000e+00 : f32
    %86 = vector.broadcast %cst_17 : f32 to vector<8x128xf32>
    %87 = arith.addf %86, %85 : vector<8x128xf32>
    %88 = arith.divf %86, %87 : vector<8x128xf32>
    %89 = math.tanh %83 : vector<8x128xf32>
    %90 = vector.extract_strided_slice %88 {offsets = [0, 0], sizes = [8, 32], strides = [1, 1]} : vector<8x128xf32> to vector<8x32xf32>
    %91 = vector.extract_strided_slice %88 {offsets = [0, 32], sizes = [8, 32], strides = [1, 1]} : vector<8x128xf32> to vector<8x32xf32>
    %92 = vector.extract_strided_slice %88 {offsets = [0, 64], sizes = [8, 32], strides = [1, 1]} : vector<8x128xf32> to vector<8x32xf32>
    %93 = vector.extract_strided_slice %89 {offsets = [0, 96], sizes = [8, 32], strides = [1, 1]} : vector<8x128xf32> to vector<8x32xf32>
    %94 = arith.mulf %91, %78 : vector<8x32xf32>
    %95 = arith.mulf %90, %93 : vector<8x32xf32>
    %96 = arith.addf %94, %95 : vector<8x32xf32>
    %97 = math.tanh %96 : vector<8x32xf32>
    %98 = arith.mulf %92, %97 : vector<8x32xf32>
    %99 = vector.extract_strided_slice %6 {offsets = [40, 0], sizes = [8, 128], strides = [1, 1]} : vector<64x128xf32> to vector<8x128xf32>
    %cst_18 = arith.constant dense<0.000000e+00> : vector<8x128xf32>
    %100 = tpu.matmul %98, %1, %cst_18 {dimension_numbers = #tpu.dot_dimension_numbers<[1], [0], [0], [1], [0, 0, 1, 1], [], []>} : vector<8x32xf32>, vector<32x128xf32>, vector<8x128xf32> -> vector<8x128xf32>
    %101 = arith.addf %99, %100 : vector<8x128xf32>
    %102 = arith.negf %101 : vector<8x128xf32>
    %103 = math.exp %102 : vector<8x128xf32>
    %cst_19 = arith.constant 1.000000e+00 : f32
    %104 = vector.broadcast %cst_19 : f32 to vector<8x128xf32>
    %105 = arith.addf %104, %103 : vector<8x128xf32>
    %106 = arith.divf %104, %105 : vector<8x128xf32>
    %107 = math.tanh %101 : vector<8x128xf32>
    %108 = vector.extract_strided_slice %106 {offsets = [0, 0], sizes = [8, 32], strides = [1, 1]} : vector<8x128xf32> to vector<8x32xf32>
    %109 = vector.extract_strided_slice %106 {offsets = [0, 32], sizes = [8, 32], strides = [1, 1]} : vector<8x128xf32> to vector<8x32xf32>
    %110 = vector.extract_strided_slice %106 {offsets = [0, 64], sizes = [8, 32], strides = [1, 1]} : vector<8x128xf32> to vector<8x32xf32>
    %111 = vector.extract_strided_slice %107 {offsets = [0, 96], sizes = [8, 32], strides = [1, 1]} : vector<8x128xf32> to vector<8x32xf32>
    %112 = arith.mulf %109, %96 : vector<8x32xf32>
    %113 = arith.mulf %108, %111 : vector<8x32xf32>
    %114 = arith.addf %112, %113 : vector<8x32xf32>
    %115 = math.tanh %114 : vector<8x32xf32>
    %116 = arith.mulf %110, %115 : vector<8x32xf32>
    %117 = vector.extract_strided_slice %6 {offsets = [48, 0], sizes = [8, 128], strides = [1, 1]} : vector<64x128xf32> to vector<8x128xf32>
    %cst_20 = arith.constant dense<0.000000e+00> : vector<8x128xf32>
    %118 = tpu.matmul %116, %1, %cst_20 {dimension_numbers = #tpu.dot_dimension_numbers<[1], [0], [0], [1], [0, 0, 1, 1], [], []>} : vector<8x32xf32>, vector<32x128xf32>, vector<8x128xf32> -> vector<8x128xf32>
    %119 = arith.addf %117, %118 : vector<8x128xf32>
    %120 = arith.negf %119 : vector<8x128xf32>
    %121 = math.exp %120 : vector<8x128xf32>
    %cst_21 = arith.constant 1.000000e+00 : f32
    %122 = vector.broadcast %cst_21 : f32 to vector<8x128xf32>
    %123 = arith.addf %122, %121 : vector<8x128xf32>
    %124 = arith.divf %122, %123 : vector<8x128xf32>
    %125 = math.tanh %119 : vector<8x128xf32>
    %126 = vector.extract_strided_slice %124 {offsets = [0, 0], sizes = [8, 32], strides = [1, 1]} : vector<8x128xf32> to vector<8x32xf32>
    %127 = vector.extract_strided_slice %124 {offsets = [0, 32], sizes = [8, 32], strides = [1, 1]} : vector<8x128xf32> to vector<8x32xf32>
    %128 = vector.extract_strided_slice %124 {offsets = [0, 64], sizes = [8, 32], strides = [1, 1]} : vector<8x128xf32> to vector<8x32xf32>
    %129 = vector.extract_strided_slice %125 {offsets = [0, 96], sizes = [8, 32], strides = [1, 1]} : vector<8x128xf32> to vector<8x32xf32>
    %130 = arith.mulf %127, %114 : vector<8x32xf32>
    %131 = arith.mulf %126, %129 : vector<8x32xf32>
    %132 = arith.addf %130, %131 : vector<8x32xf32>
    %133 = math.tanh %132 : vector<8x32xf32>
    %134 = arith.mulf %128, %133 : vector<8x32xf32>
    %135 = vector.extract_strided_slice %6 {offsets = [56, 0], sizes = [8, 128], strides = [1, 1]} : vector<64x128xf32> to vector<8x128xf32>
    %cst_22 = arith.constant dense<0.000000e+00> : vector<8x128xf32>
    %136 = tpu.matmul %134, %1, %cst_22 {dimension_numbers = #tpu.dot_dimension_numbers<[1], [0], [0], [1], [0, 0, 1, 1], [], []>} : vector<8x32xf32>, vector<32x128xf32>, vector<8x128xf32> -> vector<8x128xf32>
    %137 = arith.addf %135, %136 : vector<8x128xf32>
    %138 = arith.negf %137 : vector<8x128xf32>
    %139 = math.exp %138 : vector<8x128xf32>
    %cst_23 = arith.constant 1.000000e+00 : f32
    %140 = vector.broadcast %cst_23 : f32 to vector<8x128xf32>
    %141 = arith.addf %140, %139 : vector<8x128xf32>
    %142 = arith.divf %140, %141 : vector<8x128xf32>
    %143 = math.tanh %137 : vector<8x128xf32>
    %144 = vector.extract_strided_slice %142 {offsets = [0, 0], sizes = [8, 32], strides = [1, 1]} : vector<8x128xf32> to vector<8x32xf32>
    %145 = vector.extract_strided_slice %142 {offsets = [0, 32], sizes = [8, 32], strides = [1, 1]} : vector<8x128xf32> to vector<8x32xf32>
    %146 = vector.extract_strided_slice %142 {offsets = [0, 64], sizes = [8, 32], strides = [1, 1]} : vector<8x128xf32> to vector<8x32xf32>
    %147 = vector.extract_strided_slice %143 {offsets = [0, 96], sizes = [8, 32], strides = [1, 1]} : vector<8x128xf32> to vector<8x32xf32>
    %148 = arith.mulf %145, %132 : vector<8x32xf32>
    %149 = arith.mulf %144, %147 : vector<8x32xf32>
    %150 = arith.addf %148, %149 : vector<8x32xf32>
    %151 = math.tanh %150 : vector<8x32xf32>
    %152 = arith.mulf %146, %151 : vector<8x32xf32>
    %c1 = arith.constant 1 : index
    %c0_24 = arith.constant 0 : index
    %153 = vector.load %arg2[%c1, %c0_24] : memref<16x128xf32, #tpu.memory_space<vmem>>, vector<1x32xf32>
    %c1_25 = arith.constant 1 : index
    %c32 = arith.constant 32 : index
    %154 = vector.load %arg2[%c1_25, %c32] : memref<16x128xf32, #tpu.memory_space<vmem>>, vector<1x8xf32>
    %c1_26 = arith.constant 1 : index
    %c40 = arith.constant 40 : index
    %155 = vector.load %arg2[%c1_26, %c40] : memref<16x128xf32, #tpu.memory_space<vmem>>, vector<1x1xf32>
    %c8 = arith.constant 8 : index
    %c0_27 = arith.constant 0 : index
    %156 = vector.load %arg2[%c8, %c0_27] : memref<16x128xf32, #tpu.memory_space<vmem>>, vector<8x8xf32>
    %157 = vector.broadcast %153 : vector<1x32xf32> to vector<8x32xf32>
    %158 = arith.mulf %152, %157 : vector<8x32xf32>
    %cst_28 = arith.constant dense<0.000000e+00> : vector<8xf32>
    %159 = vector.multi_reduction <add>, %158, %cst_28 [1] : vector<8x32xf32> to vector<8xf32>
    %160 = vector.shape_cast %159 : vector<8xf32> to vector<8x1xf32>
    %161 = vector.broadcast %154 : vector<1x8xf32> to vector<8x8xf32>
    %162 = arith.mulf %156, %161 : vector<8x8xf32>
    %cst_29 = arith.constant dense<0.000000e+00> : vector<8xf32>
    %163 = vector.multi_reduction <add>, %162, %cst_29 [1] : vector<8x8xf32> to vector<8xf32>
    %164 = vector.shape_cast %163 : vector<8xf32> to vector<8x1xf32>
    %165 = arith.addf %160, %164 : vector<8x1xf32>
    %166 = vector.broadcast %155 : vector<1x1xf32> to vector<8x1xf32>
    %167 = arith.addf %165, %166 : vector<8x1xf32>
    %168 = arith.negf %167 : vector<8x1xf32>
    %169 = math.exp %168 : vector<8x1xf32>
    %cst_30 = arith.constant 1.000000e+00 : f32
    %170 = vector.broadcast %cst_30 : f32 to vector<8x1xf32>
    %171 = arith.addf %170, %169 : vector<8x1xf32>
    %172 = arith.divf %170, %171 : vector<8x1xf32>
    %173 = vector.shape_cast %172 : vector<8x1xf32> to vector<8x1xf32>
    %174 = vector.broadcast %173 : vector<8x1xf32> to vector<8x128xf32>
    %c0_31 = arith.constant 0 : index
    %c0_32 = arith.constant 0 : index
    %175 = vector.load %arg3[%c0_31, %c0_32] : memref<8x128xf32, #tpu.memory_space<vmem>>, vector<8x128xf32>
    tpu.vector_store %arg3[%c0_31, %c0_32], %174 {strides = array<i32>} : memref<8x128xf32, #tpu.memory_space<vmem>>, vector<8x128xf32>,
    return
  }
}

</mosaic_0001>

<llo_original>
// kernel: tpu_custom_call.1
$region0: #{tpu_custom_call.1}
  #allocation0 [shape = 'u32[]', space=smem, size = 0x4, offset = 0x4, fixed_abs, tag = 'smem constant byte address 0x4 - core index']
  #allocation1 [shape = 'u32[144,128]{1,0:T(1,128)}', space=vmem, size = 0x12000, scoped, tag = 'internal scratch']
  %s0 = inlined_call_operand.vmem [shape: f32[64,16], index: 0, kind: input, shape index: {}]
  %s1 = inlined_call_operand.vmem [shape: f32[48,128], index: 1, kind: input, shape index: {}]
  %s2 = inlined_call_operand.vmem [shape: f32[16,128], index: 2, kind: input, shape index: {}]
  %s3 = inlined_call_operand.hbm [shape: f32[8,128], index: 3, kind: output, shape index: {}]
  %s4 = sld [smem:[#allocation0]]
  $region22: #{tpu_custom_call.1} parent=0
    _
  %s6 = ssub.s32 1, %s4
  %s7 = scalar_select 0, %s6, %s4
  $region1: #{tpu_custom_call.1} parent=0
    #allocation2 [shape = 'u8[4096]{0}', space=vmem, size = 0x1000, scoped, tag = 'output window, operand 0, single buffered']
    #allocation3 [shape = 's32[1]{0}', space=sflag, size = 0x4, scoped, tag = 'scoped memory for tpu_custom_call.1']
    %8 = vsyncpa [#allocation3], 0
    // Predicated region
    $region2: #{tpu_custom_call.1} parent=1 // pred_check
      _
    $region3: #{tpu_custom_call.1} parent=1 // pred_check_branch
      %10 = sbr.rel (0) target = $region5
    $region4: #{tpu_custom_call.1} parent=1 // pred_region
      _
    $region5: #{tpu_custom_call.1} parent=1 // pred_fallthru
      _
    // Predicated region
    $region6: #{tpu_custom_call.1} parent=1 // pred_check
      _
    $region7: #{tpu_custom_call.1} parent=1 // pred_check_branch
      %12 = sbr.rel (0) target = $region9
    $region8: #{tpu_custom_call.1} parent=1 // pred_region
      _
    $region9: #{tpu_custom_call.1} parent=1 // pred_fallthru
      _
    // Predicated region
    $region10: #{tpu_custom_call.1} parent=1 // pred_check
      _
    $region11: #{tpu_custom_call.1} parent=1 // pred_check_branch
      %14 = sbr.rel (0) target = $region13
    $region12: #{tpu_custom_call.1} parent=1 // pred_region
      _
    $region13: #{tpu_custom_call.1} parent=1 // pred_fallthru
      _
    %v15 = vld [vmem:[%s1] sm:$0xff]
    %v16 = vld [vmem:[%s1 + $0x8] sm:$0xff]
    %v17 = vld [vmem:[%s1 + $0x10] sm:$0xff]
    %v18 = vld [vmem:[%s1 + $0x18] sm:$0xff]
    %v19 = vld [vmem:[%s1 + $0x20] sm:$0xff]
    %v20 = vld [vmem:[%s1 + $0x28] sm:$0xff]
    %v21 = vld [vmem:[%s2] sm:$0x1]
    %v22 = vld [vmem:[%s0] sm:$0xff]
    %v23 = vld [vmem:[%s0 + $0x8] sm:$0xff]
    %v24 = vld [vmem:[%s0 + $0x10] sm:$0xff]
    %v25 = vld [vmem:[%s0 + $0x18] sm:$0xff]
    %v26 = vld [vmem:[%s0 + $0x20] sm:$0xff]
    %v27 = vld [vmem:[%s0 + $0x28] sm:$0xff]
    %v28 = vld [vmem:[%s0 + $0x30] sm:$0xff]
    %v29 = vld [vmem:[%s0 + $0x38] sm:$0xff]
    %v30 = vlaneseq
    %v31 = vshrl.u32 %v30, 7
    %v32 = vsub.s32 0, %v31
    %v33 = vrot.slane %v21, %v32
    %vm34 = vcmask 130048
    %v36 = vsel %vm34, %v22, 0
    %v39 = vsel %vm34, %v23, 0
    %v42 = vsel %vm34, %v24, 0
    %v45 = vsel %vm34, %v25, 0
    %v48 = vsel %vm34, %v26, 0
    %v51 = vsel %vm34, %v27, 0
    %v54 = vsel %vm34, %v28, 0
    %v57 = vsel %vm34, %v29, 0
    %59 = vmatprep.subr.mxu0 0.0
    %60 = vmatpush1.msra.mxu0 0.0
    %61 = vmatprep.subr.mxu0 0.0
    %62 = vmatpush1.msra.mxu0 0.0
    %63 = vmatprep.subr.mxu0 0.0
    %64 = vmatpush1.msra.mxu0 0.0
    %65 = vmatprep.subr.mxu0 0.0
    %66 = vmatpush1.msra.mxu0 0.0
    %67 = vmatprep.subr.mxu0 0.0
    %68 = vmatpush1.msra.mxu0 0.0
    %69 = vmatprep.subr.mxu0 0.0
    %70 = vmatpush1.msra.mxu0 0.0
    %71 = vmatprep.subr.mxu0 0.0
    %72 = vmatpush1.msra.mxu0 0.0
    %73 = vmatprep.subr.mxu0 0.0
    %74 = vmatpush1.msra.mxu0 0.0
    %75 = vmatprep.subr.mxu0 0.0
    %76 = vmatpush1.msra.mxu0 0.0
    %77 = vmatprep.subr.mxu0 0.0
    %78 = vmatpush1.msra.mxu0 0.0
    %79 = vmatprep.subr.mxu0 0.0
    %80 = vmatpush1.msra.mxu0 0.0
    %81 = vmatprep.subr.mxu0 0.0
    %82 = vmatpush1.msra.mxu0 0.0
    %83 = vmatprep.subr.mxu0 0.0
    %84 = vmatpush1.msra.mxu0 0.0
    %85 = vmatprep.subr.mxu0 0.0
    %86 = vmatpush1.msra.mxu0 0.0
    %87 = vmatprep.subr.mxu0 0.0
    %88 = vmatpush1.msra.mxu0 %v16
    %89 = vmatprep.subr.mxu0 0.0
    %90 = vmatpush1.msra.mxu0 %v15
    %91 = vmatprep.subr.mxu0 0.0
    %92 = vmatpush2.msra.mxu0 0.0
    %93 = vmatprep.subr.mxu0 0.0
    %94 = vmatpush2.msra.mxu0 0.0
    %95 = vmatprep.subr.mxu0 0.0
    %96 = vmatpush2.msra.mxu0 0.0
    %97 = vmatprep.subr.mxu0 0.0
    %98 = vmatpush2.msra.mxu0 0.0
    %99 = vmatprep.subr.mxu0 0.0
    %100 = vmatpush2.msra.mxu0 0.0
    %101 = vmatprep.subr.mxu0 0.0
    %102 = vmatpush2.msra.mxu0 0.0
    %103 = vmatprep.subr.mxu0 0.0
    %104 = vmatpush2.msra.mxu0 0.0
    %105 = vmatprep.subr.mxu0 0.0
    %106 = vmatpush2.msra.mxu0 0.0
    %107 = vmatprep.subr.mxu0 0.0
    %108 = vmatpush2.msra.mxu0 0.0
    %109 = vmatprep.subr.mxu0 0.0
    %110 = vmatpush2.msra.mxu0 0.0
    %111 = vmatprep.subr.mxu0 0.0
    %112 = vmatpush2.msra.mxu0 0.0
    %113 = vmatprep.subr.mxu0 0.0
    %114 = vmatpush2.msra.mxu0 0.0
    %115 = vmatprep.subr.mxu0 0.0
    %116 = vmatpush2.msra.mxu0 0.0
    %117 = vmatprep.subr.mxu0 0.0
    %118 = vmatpush2.msra.mxu0 0.0
    %119 = vmatprep.subr.mxu0 0.0
    %120 = vmatpush2.msra.mxu0 0.0
    %121 = vmatprep.subr.mxu0 0.0
    %122 = vmatpush2.msra.mxu0 0.0
    %123 = vmatprep.mubr.f32.mxu0 0.0
    %124 = vmatmul.mubr.f32.gmra.mxu0 %v36
    %v125 = vpop.f32.mrf.mxu0
    %v126 = vadd.f32 %v33, %v125
    %v127 = vpop.f32.mrf.mxu0
    %128 = vmatprep.mubr.f32.mxu0 0.0
    %129 = vmatmul.mubr.f32.gmra.mxu0 %v39
    %v130 = vpop.f32.mrf.mxu0
    %v131 = vadd.f32 %v33, %v130
    %v132 = vpop.f32.mrf.mxu0
    %133 = vmatprep.mubr.f32.mxu0 0.0
    %134 = vmatmul.mubr.f32.gmra.mxu0 %v42
    %v135 = vpop.f32.mrf.mxu0
    %v136 = vadd.f32 %v33, %v135
    %v137 = vpop.f32.mrf.mxu0
    %138 = vmatprep.mubr.f32.mxu0 0.0
    %139 = vmatmul.mubr.f32.gmra.mxu0 %v45
    %v140 = vpop.f32.mrf.mxu0
    %v141 = vadd.f32 %v33, %v140
    %v142 = vpop.f32.mrf.mxu0
    %143 = vmatprep.mubr.f32.mxu0 0.0
    %144 = vmatmul.mubr.f32.gmra.mxu0 %v48
    %v145 = vpop.f32.mrf.mxu0
    %v146 = vadd.f32 %v33, %v145
    %v147 = vpop.f32.mrf.mxu0
    %148 = vmatprep.mubr.f32.mxu0 0.0
    %149 = vmatmul.mubr.f32.gmra.mxu0 %v51
    %v150 = vpop.f32.mrf.mxu0
    %v151 = vadd.f32 %v33, %v150
    %v152 = vpop.f32.mrf.mxu0
    %153 = vmatprep.mubr.f32.mxu0 0.0
    %154 = vmatmul.mubr.f32.gmra.mxu0 %v54
    %v155 = vpop.f32.mrf.mxu0
    %v156 = vadd.f32 %v33, %v155
    %v157 = vpop.f32.mrf.mxu0
    %158 = vmatprep.mubr.f32.mxu0 0.0
    %159 = vmatmul.mubr.f32.gmra.mxu0 %v57
    %v160 = vpop.f32.mrf.mxu0
    %v161 = vadd.f32 %v33, %v160
    %v162 = vpop.f32.mrf.mxu0
    %163 = vdwg.mxu0
    %vm164 = vcmask 261120
    %v166 = vsel %vm164, 0.0, 0
    %168 = vmatprep.subr.mxu0 0.0
    %169 = vmatpush1.msra.mxu0 0.0
    %170 = vmatprep.subr.mxu0 0.0
    %171 = vmatpush1.msra.mxu0 0.0
    %172 = vmatprep.subr.mxu0 0.0
    %173 = vmatpush1.msra.mxu0 0.0
    %174 = vmatprep.subr.mxu0 0.0
    %175 = vmatpush1.msra.mxu0 0.0
    %176 = vmatprep.subr.mxu0 0.0
    %177 = vmatpush1.msra.mxu0 0.0
    %178 = vmatprep.subr.mxu0 0.0
    %179 = vmatpush1.msra.mxu0 0.0
    %180 = vmatprep.subr.mxu0 0.0
    %181 = vmatpush1.msra.mxu0 0.0
    %182 = vmatprep.subr.mxu0 0.0
    %183 = vmatpush1.msra.mxu0 0.0
    %184 = vmatprep.subr.mxu0 0.0
    %185 = vmatpush1.msra.mxu0 0.0
    %186 = vmatprep.subr.mxu0 0.0
    %187 = vmatpush1.msra.mxu0 0.0
    %188 = vmatprep.subr.mxu0 0.0
    %189 = vmatpush1.msra.mxu0 0.0
    %190 = vmatprep.subr.mxu0 0.0
    %191 = vmatpush1.msra.mxu0 0.0
    %192 = vmatprep.subr.mxu0 0.0
    %193 = vmatpush1.msra.mxu0 %v20
    %194 = vmatprep.subr.mxu0 0.0
    %195 = vmatpush1.msra.mxu0 %v19
    %196 = vmatprep.subr.mxu0 0.0
    %197 = vmatpush1.msra.mxu0 %v18
    %198 = vmatprep.subr.mxu0 0.0
    %199 = vmatpush1.msra.mxu0 %v17
    %200 = vmatprep.subr.mxu0 0.0
    %201 = vmatpush2.msra.mxu0 0.0
    %202 = vmatprep.subr.mxu0 0.0
    %203 = vmatpush2.msra.mxu0 0.0
    %204 = vmatprep.subr.mxu0 0.0
    %205 = vmatpush2.msra.mxu0 0.0
    %206 = vmatprep.subr.mxu0 0.0
    %207 = vmatpush2.msra.mxu0 0.0
    %208 = vmatprep.subr.mxu0 0.0
    %209 = vmatpush2.msra.mxu0 0.0
    %210 = vmatprep.subr.mxu0 0.0
    %211 = vmatpush2.msra.mxu0 0.0
    %212 = vmatprep.subr.mxu0 0.0
    %213 = vmatpush2.msra.mxu0 0.0
    %214 = vmatprep.subr.mxu0 0.0
    %215 = vmatpush2.msra.mxu0 0.0
    %216 = vmatprep.subr.mxu0 0.0
    %217 = vmatpush2.msra.mxu0 0.0
    %218 = vmatprep.subr.mxu0 0.0
    %219 = vmatpush2.msra.mxu0 0.0
    %220 = vmatprep.subr.mxu0 0.0
    %221 = vmatpush2.msra.mxu0 0.0
    %222 = vmatprep.subr.mxu0 0.0
    %223 = vmatpush2.msra.mxu0 0.0
    %224 = vmatprep.subr.mxu0 0.0
    %225 = vmatpush2.msra.mxu0 0.0
    %226 = vmatprep.subr.mxu0 0.0
    %227 = vmatpush2.msra.mxu0 0.0
    %228 = vmatprep.subr.mxu0 0.0
    %229 = vmatpush2.msra.mxu0 0.0
    %230 = vmatprep.subr.mxu0 0.0
    %231 = vmatpush2.msra.mxu0 0.0
    %232 = vmatprep.mubr.f32.mxu0 0.0
    %233 = vmatmul.mubr.f32.gmra.mxu0 %v166
    %v234 = vpop.f32.mrf.mxu0
    %v235 = vadd.f32 0.0, %v234
    %v236 = vpop.f32.mrf.mxu0
    %237 = vdwg.mxu0
    %v238 = vadd.f32 %v126, %v235
    %v239 = vxor.u32 %v238, 2147483648
    %v240 = vmul.f32 %v239, 1.442695
    %v241 = vpow.pop %v240
    %v242 = vadd.f32 %v241, 1.0
    %v243 = vrcp.pop %v242
    %v244 = vmul.f32 1.0, %v243
    %v245 = vtanh.pop %v238
    %v246 = vmul.f32 %v244, 0.0
    %248 = vrot.lane.b32.xlu0 %v245, 32
    %v249 = vpop.permute.xlu0 %248
    %v251 = vmul.f32 %v244, %v249
    %253 = vrot.lane.b32.xlu0 %v251, 32
    %v254 = vpop.permute.xlu0 %253
    %v256 = vadd.f32 %v246, %v254
    %v257 = vtanh.pop %v256
    %259 = vrot.lane.b32.xlu0 %v257, 32
    %v260 = vpop.permute.xlu0 %259
    %v262 = vmul.f32 %v244, %v260
    %264 = vrot.lane.b32.xlu0 %v262, 64
    %v265 = vpop.permute.xlu0 %264
    %v266 = vsel %vm164, %v265, 0
    %268 = vmatprep.subr.mxu0 0.0
    %269 = vmatpush1.msra.mxu0 0.0
    %270 = vmatprep.subr.mxu0 0.0
    %271 = vmatpush1.msra.mxu0 0.0
    %272 = vmatprep.subr.mxu0 0.0
    %273 = vmatpush1.msra.mxu0 0.0
    %274 = vmatprep.subr.mxu0 0.0
    %275 = vmatpush1.msra.mxu0 0.0
    %276 = vmatprep.subr.mxu0 0.0
    %277 = vmatpush1.msra.mxu0 0.0
    %278 = vmatprep.subr.mxu0 0.0
    %279 = vmatpush1.msra.mxu0 0.0
    %280 = vmatprep.subr.mxu0 0.0
    %281 = vmatpush1.msra.mxu0 0.0
    %282 = vmatprep.subr.mxu0 0.0
    %283 = vmatpush1.msra.mxu0 0.0
    %284 = vmatprep.subr.mxu0 0.0
    %285 = vmatpush1.msra.mxu0 0.0
    %286 = vmatprep.subr.mxu0 0.0
    %287 = vmatpush1.msra.mxu0 0.0
    %288 = vmatprep.subr.mxu0 0.0
    %289 = vmatpush1.msra.mxu0 0.0
    %290 = vmatprep.subr.mxu0 0.0
    %291 = vmatpush1.msra.mxu0 0.0
    %292 = vmatprep.subr.mxu0 0.0
    %293 = vmatpush1.msra.mxu0 %v20
    %294 = vmatprep.subr.mxu0 0.0
    %295 = vmatpush1.msra.mxu0 %v19
    %296 = vmatprep.subr.mxu0 0.0
    %297 = vmatpush1.msra.mxu0 %v18
    %298 = vmatprep.subr.mxu0 0.0
    %299 = vmatpush1.msra.mxu0 %v17
    %300 = vmatprep.subr.mxu0 0.0
    %301 = vmatpush2.msra.mxu0 0.0
    %302 = vmatprep.subr.mxu0 0.0
    %303 = vmatpush2.msra.mxu0 0.0
    %304 = vmatprep.subr.mxu0 0.0
    %305 = vmatpush2.msra.mxu0 0.0
    %306 = vmatprep.subr.mxu0 0.0
    %307 = vmatpush2.msra.mxu0 0.0
    %308 = vmatprep.subr.mxu0 0.0
    %309 = vmatpush2.msra.mxu0 0.0
    %310 = vmatprep.subr.mxu0 0.0
    %311 = vmatpush2.msra.mxu0 0.0
    %312 = vmatprep.subr.mxu0 0.0
    %313 = vmatpush2.msra.mxu0 0.0
    %314 = vmatprep.subr.mxu0 0.0
    %315 = vmatpush2.msra.mxu0 0.0
    %316 = vmatprep.subr.mxu0 0.0
    %317 = vmatpush2.msra.mxu0 0.0
    %318 = vmatprep.subr.mxu0 0.0
    %319 = vmatpush2.msra.mxu0 0.0
    %320 = vmatprep.subr.mxu0 0.0
    %321 = vmatpush2.msra.mxu0 0.0
    %322 = vmatprep.subr.mxu0 0.0
    %323 = vmatpush2.msra.mxu0 0.0
    %324 = vmatprep.subr.mxu0 0.0
    %325 = vmatpush2.msra.mxu0 0.0
    %326 = vmatprep.subr.mxu0 0.0
    %327 = vmatpush2.msra.mxu0 0.0
    %328 = vmatprep.subr.mxu0 0.0
    %329 = vmatpush2.msra.mxu0 0.0
    %330 = vmatprep.subr.mxu0 0.0
    %331 = vmatpush2.msra.mxu0 0.0
    %332 = vmatprep.mubr.f32.mxu0 0.0
    %333 = vmatmul.mubr.f32.gmra.mxu0 %v266
    %v334 = vpop.f32.mrf.mxu0
    %v335 = vadd.f32 0.0, %v334
    %v336 = vpop.f32.mrf.mxu0
    %337 = vdwg.mxu0
    %v338 = vadd.f32 %v131, %v335
    %v339 = vxor.u32 %v338, 2147483648
    %v340 = vmul.f32 %v339, 1.442695
    %v341 = vpow.pop %v340
    %v342 = vadd.f32 %v341, 1.0
    %v343 = vrcp.pop %v342
    %v344 = vmul.f32 1.0, %v343
    %v345 = vtanh.pop %v338
    %v346 = vmul.f32 %v344, %v256
    %348 = vrot.lane.b32.xlu0 %v345, 32
    %v349 = vpop.permute.xlu0 %348
    %v351 = vmul.f32 %v344, %v349
    %353 = vrot.lane.b32.xlu0 %v351, 32
    %v354 = vpop.permute.xlu0 %353
    %v356 = vadd.f32 %v346, %v354
    %v357 = vtanh.pop %v356
    %359 = vrot.lane.b32.xlu0 %v357, 32
    %v360 = vpop.permute.xlu0 %359
    %v362 = vmul.f32 %v344, %v360
    %364 = vrot.lane.b32.xlu0 %v362, 64
    %v365 = vpop.permute.xlu0 %364
    %v366 = vsel %vm164, %v365, 0
    %368 = vmatprep.subr.mxu0 0.0
    %369 = vmatpush1.msra.mxu0 0.0
    %370 = vmatprep.subr.mxu0 0.0
    %371 = vmatpush1.msra.mxu0 0.0
    %372 = vmatprep.subr.mxu0 0.0
    %373 = vmatpush1.msra.mxu0 0.0
    %374 = vmatprep.subr.mxu0 0.0
    %375 = vmatpush1.msra.mxu0 0.0
    %376 = vmatprep.subr.mxu0 0.0
    %377 = vmatpush1.msra.mxu0 0.0
    %378 = vmatprep.subr.mxu0 0.0
    %379 = vmatpush1.msra.mxu0 0.0
    %380 = vmatprep.subr.mxu0 0.0
    %381 = vmatpush1.msra.mxu0 0.0
    %382 = vmatprep.subr.mxu0 0.0
    %383 = vmatpush1.msra.mxu0 0.0
    %384 = vmatprep.subr.mxu0 0.0
    %385 = vmatpush1.msra.mxu0 0.0
    %386 = vmatprep.subr.mxu0 0.0
    %387 = vmatpush1.msra.mxu0 0.0
    %388 = vmatprep.subr.mxu0 0.0
    %389 = vmatpush1.msra.mxu0 0.0
    %390 = vmatprep.subr.mxu0 0.0
    %391 = vmatpush1.msra.mxu0 0.0
    %392 = vmatprep.subr.mxu0 0.0
    %393 = vmatpush1.msra.mxu0 %v20
    %394 = vmatprep.subr.mxu0 0.0
    %395 = vmatpush1.msra.mxu0 %v19
    %396 = vmatprep.subr.mxu0 0.0
    %397 = vmatpush1.msra.mxu0 %v18
    %398 = vmatprep.subr.mxu0 0.0
    %399 = vmatpush1.msra.mxu0 %v17
    %400 = vmatprep.subr.mxu0 0.0
    %401 = vmatpush2.msra.mxu0 0.0
    %402 = vmatprep.subr.mxu0 0.0
    %403 = vmatpush2.msra.mxu0 0.0
    %404 = vmatprep.subr.mxu0 0.0
    %405 = vmatpush2.msra.mxu0 0.0
    %406 = vmatprep.subr.mxu0 0.0
    %407 = vmatpush2.msra.mxu0 0.0
    %408 = vmatprep.subr.mxu0 0.0
    %409 = vmatpush2.msra.mxu0 0.0
    %410 = vmatprep.subr.mxu0 0.0
    %411 = vmatpush2.msra.mxu0 0.0
    %412 = vmatprep.subr.mxu0 0.0
    %413 = vmatpush2.msra.mxu0 0.0
    %414 = vmatprep.subr.mxu0 0.0
    %415 = vmatpush2.msra.mxu0 0.0
    %416 = vmatprep.subr.mxu0 0.0
    %417 = vmatpush2.msra.mxu0 0.0
    %418 = vmatprep.subr.mxu0 0.0
    %419 = vmatpush2.msra.mxu0 0.0
    %420 = vmatprep.subr.mxu0 0.0
    %421 = vmatpush2.msra.mxu0 0.0
    %422 = vmatprep.subr.mxu0 0.0
    %423 = vmatpush2.msra.mxu0 0.0
    %424 = vmatprep.subr.mxu0 0.0
    %425 = vmatpush2.msra.mxu0 0.0
    %426 = vmatprep.subr.mxu0 0.0
    %427 = vmatpush2.msra.mxu0 0.0
    %428 = vmatprep.subr.mxu0 0.0
    %429 = vmatpush2.msra.mxu0 0.0
    %430 = vmatprep.subr.mxu0 0.0
    %431 = vmatpush2.msra.mxu0 0.0
    %432 = vmatprep.mubr.f32.mxu0 0.0
    %433 = vmatmul.mubr.f32.gmra.mxu0 %v366
    %v434 = vpop.f32.mrf.mxu0
    %v435 = vadd.f32 0.0, %v434
    %v436 = vpop.f32.mrf.mxu0
    %437 = vdwg.mxu0
    %v438 = vadd.f32 %v136, %v435
    %v439 = vxor.u32 %v438, 2147483648
    %v440 = vmul.f32 %v439, 1.442695
    %v441 = vpow.pop %v440
    %v442 = vadd.f32 %v441, 1.0
    %v443 = vrcp.pop %v442
    %v444 = vmul.f32 1.0, %v443
    %v445 = vtanh.pop %v438
    %v446 = vmul.f32 %v444, %v356
    %448 = vrot.lane.b32.xlu0 %v445, 32
    %v449 = vpop.permute.xlu0 %448
    %v451 = vmul.f32 %v444, %v449
    %453 = vrot.lane.b32.xlu0 %v451, 32
    %v454 = vpop.permute.xlu0 %453
    %v456 = vadd.f32 %v446, %v454
    %v457 = vtanh.pop %v456
    %459 = vrot.lane.b32.xlu0 %v457, 32
    %v460 = vpop.permute.xlu0 %459
    %v462 = vmul.f32 %v444, %v460
    %464 = vrot.lane.b32.xlu0 %v462, 64
    %v465 = vpop.permute.xlu0 %464
    %v466 = vsel %vm164, %v465, 0
    %468 = vmatprep.subr.mxu0 0.0
    %469 = vmatpush1.msra.mxu0 0.0
    %470 = vmatprep.subr.mxu0 0.0
    %471 = vmatpush1.msra.mxu0 0.0
    %472 = vmatprep.subr.mxu0 0.0
    %473 = vmatpush1.msra.mxu0 0.0
    %474 = vmatprep.subr.mxu0 0.0
    %475 = vmatpush1.msra.mxu0 0.0
    %476 = vmatprep.subr.mxu0 0.0
    %477 = vmatpush1.msra.mxu0 0.0
    %478 = vmatprep.subr.mxu0 0.0
    %479 = vmatpush1.msra.mxu0 0.0
    %480 = vmatprep.subr.mxu0 0.0
    %481 = vmatpush1.msra.mxu0 0.0
    %482 = vmatprep.subr.mxu0 0.0
    %483 = vmatpush1.msra.mxu0 0.0
    %484 = vmatprep.subr.mxu0 0.0
    %485 = vmatpush1.msra.mxu0 0.0
    %486 = vmatprep.subr.mxu0 0.0
    %487 = vmatpush1.msra.mxu0 0.0
    %488 = vmatprep.subr.mxu0 0.0
    %489 = vmatpush1.msra.mxu0 0.0
    %490 = vmatprep.subr.mxu0 0.0
    %491 = vmatpush1.msra.mxu0 0.0
    %492 = vmatprep.subr.mxu0 0.0
    %493 = vmatpush1.msra.mxu0 %v20
    %494 = vmatprep.subr.mxu0 0.0
    %495 = vmatpush1.msra.mxu0 %v19
    %496 = vmatprep.subr.mxu0 0.0
    %497 = vmatpush1.msra.mxu0 %v18
    %498 = vmatprep.subr.mxu0 0.0
    %499 = vmatpush1.msra.mxu0 %v17
    %500 = vmatprep.subr.mxu0 0.0
    %501 = vmatpush2.msra.mxu0 0.0
    %502 = vmatprep.subr.mxu0 0.0
    %503 = vmatpush2.msra.mxu0 0.0
    %504 = vmatprep.subr.mxu0 0.0
    %505 = vmatpush2.msra.mxu0 0.0
    %506 = vmatprep.subr.mxu0 0.0
    %507 = vmatpush2.msra.mxu0 0.0
    %508 = vmatprep.subr.mxu0 0.0
    %509 = vmatpush2.msra.mxu0 0.0
    %510 = vmatprep.subr.mxu0 0.0
    %511 = vmatpush2.msra.mxu0 0.0
    %512 = vmatprep.subr.mxu0 0.0
    %513 = vmatpush2.msra.mxu0 0.0
    %514 = vmatprep.subr.mxu0 0.0
    %515 = vmatpush2.msra.mxu0 0.0
    %516 = vmatprep.subr.mxu0 0.0
    %517 = vmatpush2.msra.mxu0 0.0
    %518 = vmatprep.subr.mxu0 0.0
    %519 = vmatpush2.msra.mxu0 0.0
    %520 = vmatprep.subr.mxu0 0.0
    %521 = vmatpush2.msra.mxu0 0.0
    %522 = vmatprep.subr.mxu0 0.0
    %523 = vmatpush2.msra.mxu0 0.0
    %524 = vmatprep.subr.mxu0 0.0
    %525 = vmatpush2.msra.mxu0 0.0
    %526 = vmatprep.subr.mxu0 0.0
    %527 = vmatpush2.msra.mxu0 0.0
    %528 = vmatprep.subr.mxu0 0.0
    %529 = vmatpush2.msra.mxu0 0.0
    %530 = vmatprep.subr.mxu0 0.0
    %531 = vmatpush2.msra.mxu0 0.0
    %532 = vmatprep.mubr.f32.mxu0 0.0
    %533 = vmatmul.mubr.f32.gmra.mxu0 %v466
    %v534 = vpop.f32.mrf.mxu0
    %v535 = vadd.f32 0.0, %v534
    %v536 = vpop.f32.mrf.mxu0
    %537 = vdwg.mxu0
    %v538 = vadd.f32 %v141, %v535
    %v539 = vxor.u32 %v538, 2147483648
    %v540 = vmul.f32 %v539, 1.442695
    %v541 = vpow.pop %v540
    %v542 = vadd.f32 %v541, 1.0
    %v543 = vrcp.pop %v542
    %v544 = vmul.f32 1.0, %v543
    %v545 = vtanh.pop %v538
    %v546 = vmul.f32 %v544, %v456
    %548 = vrot.lane.b32.xlu0 %v545, 32
    %v549 = vpop.permute.xlu0 %548
    %v551 = vmul.f32 %v544, %v549
    %553 = vrot.lane.b32.xlu0 %v551, 32
    %v554 = vpop.permute.xlu0 %553
    %v556 = vadd.f32 %v546, %v554
    %v557 = vtanh.pop %v556
    %559 = vrot.lane.b32.xlu0 %v557, 32
    %v560 = vpop.permute.xlu0 %559
    %v562 = vmul.f32 %v544, %v560
    %564 = vrot.lane.b32.xlu0 %v562, 64
    %v565 = vpop.permute.xlu0 %564
    %v566 = vsel %vm164, %v565, 0
    %568 = vmatprep.subr.mxu0 0.0
    %569 = vmatpush1.msra.mxu0 0.0
    %570 = vmatprep.subr.mxu0 0.0
    %571 = vmatpush1.msra.mxu0 0.0
    %572 = vmatprep.subr.mxu0 0.0
    %573 = vmatpush1.msra.mxu0 0.0
    %574 = vmatprep.subr.mxu0 0.0
    %575 = vmatpush1.msra.mxu0 0.0
    %576 = vmatprep.subr.mxu0 0.0
    %577 = vmatpush1.msra.mxu0 0.0
    %578 = vmatprep.subr.mxu0 0.0
    %579 = vmatpush1.msra.mxu0 0.0
    %580 = vmatprep.subr.mxu0 0.0
    %581 = vmatpush1.msra.mxu0 0.0
    %582 = vmatprep.subr.mxu0 0.0
    %583 = vmatpush1.msra.mxu0 0.0
    %584 = vmatprep.subr.mxu0 0.0
    %585 = vmatpush1.msra.mxu0 0.0
    %586 = vmatprep.subr.mxu0 0.0
    %587 = vmatpush1.msra.mxu0 0.0
    %588 = vmatprep.subr.mxu0 0.0
    %589 = vmatpush1.msra.mxu0 0.0
    %590 = vmatprep.subr.mxu0 0.0
    %591 = vmatpush1.msra.mxu0 0.0
    %592 = vmatprep.subr.mxu0 0.0
    %593 = vmatpush1.msra.mxu0 %v20
    %594 = vmatprep.subr.mxu0 0.0
    %595 = vmatpush1.msra.mxu0 %v19
    %596 = vmatprep.subr.mxu0 0.0
    %597 = vmatpush1.msra.mxu0 %v18
    %598 = vmatprep.subr.mxu0 0.0
    %599 = vmatpush1.msra.mxu0 %v17
    %600 = vmatprep.subr.mxu0 0.0
    %601 = vmatpush2.msra.mxu0 0.0
    %602 = vmatprep.subr.mxu0 0.0
    %603 = vmatpush2.msra.mxu0 0.0
    %604 = vmatprep.subr.mxu0 0.0
    %605 = vmatpush2.msra.mxu0 0.0
    %606 = vmatprep.subr.mxu0 0.0
    %607 = vmatpush2.msra.mxu0 0.0
    %608 = vmatprep.subr.mxu0 0.0
    %609 = vmatpush2.msra.mxu0 0.0
    %610 = vmatprep.subr.mxu0 0.0
    %611 = vmatpush2.msra.mxu0 0.0
    %612 = vmatprep.subr.mxu0 0.0
    %613 = vmatpush2.msra.mxu0 0.0
    %614 = vmatprep.subr.mxu0 0.0
    %615 = vmatpush2.msra.mxu0 0.0
    %616 = vmatprep.subr.mxu0 0.0
    %617 = vmatpush2.msra.mxu0 0.0
    %618 = vmatprep.subr.mxu0 0.0
    %619 = vmatpush2.msra.mxu0 0.0
    %620 = vmatprep.subr.mxu0 0.0
    %621 = vmatpush2.msra.mxu0 0.0
    %622 = vmatprep.subr.mxu0 0.0
    %623 = vmatpush2.msra.mxu0 0.0
    %624 = vmatprep.subr.mxu0 0.0
    %625 = vmatpush2.msra.mxu0 0.0
    %626 = vmatprep.subr.mxu0 0.0
    %627 = vmatpush2.msra.mxu0 0.0
    %628 = vmatprep.subr.mxu0 0.0
    %629 = vmatpush2.msra.mxu0 0.0
    %630 = vmatprep.subr.mxu0 0.0
    %631 = vmatpush2.msra.mxu0 0.0
    %632 = vmatprep.mubr.f32.mxu0 0.0
    %633 = vmatmul.mubr.f32.gmra.mxu0 %v566
    %v634 = vpop.f32.mrf.mxu0
    %v635 = vadd.f32 0.0, %v634
    %v636 = vpop.f32.mrf.mxu0
    %637 = vdwg.mxu0
    %v638 = vadd.f32 %v146, %v635
    %v639 = vxor.u32 %v638, 2147483648
    %v640 = vmul.f32 %v639, 1.442695
    %v641 = vpow.pop %v640
    %v642 = vadd.f32 %v641, 1.0
    %v643 = vrcp.pop %v642
    %v644 = vmul.f32 1.0, %v643
    %v645 = vtanh.pop %v638
    %v646 = vmul.f32 %v644, %v556
    %648 = vrot.lane.b32.xlu0 %v645, 32
    %v649 = vpop.permute.xlu0 %648
    %v651 = vmul.f32 %v644, %v649
    %653 = vrot.lane.b32.xlu0 %v651, 32
    %v654 = vpop.permute.xlu0 %653
    %v656 = vadd.f32 %v646, %v654
    %v657 = vtanh.pop %v656
    %659 = vrot.lane.b32.xlu0 %v657, 32
    %v660 = vpop.permute.xlu0 %659
    %v662 = vmul.f32 %v644, %v660
    %664 = vrot.lane.b32.xlu0 %v662, 64
    %v665 = vpop.permute.xlu0 %664
    %v666 = vsel %vm164, %v665, 0
    %668 = vmatprep.subr.mxu0 0.0
    %669 = vmatpush1.msra.mxu0 0.0
    %670 = vmatprep.subr.mxu0 0.0
    %671 = vmatpush1.msra.mxu0 0.0
    %672 = vmatprep.subr.mxu0 0.0
    %673 = vmatpush1.msra.mxu0 0.0
    %674 = vmatprep.subr.mxu0 0.0
    %675 = vmatpush1.msra.mxu0 0.0
    %676 = vmatprep.subr.mxu0 0.0
    %677 = vmatpush1.msra.mxu0 0.0
    %678 = vmatprep.subr.mxu0 0.0
    %679 = vmatpush1.msra.mxu0 0.0
    %680 = vmatprep.subr.mxu0 0.0
    %681 = vmatpush1.msra.mxu0 0.0
    %682 = vmatprep.subr.mxu0 0.0
    %683 = vmatpush1.msra.mxu0 0.0
    %684 = vmatprep.subr.mxu0 0.0
    %685 = vmatpush1.msra.mxu0 0.0
    %686 = vmatprep.subr.mxu0 0.0
    %687 = vmatpush1.msra.mxu0 0.0
    %688 = vmatprep.subr.mxu0 0.0
    %689 = vmatpush1.msra.mxu0 0.0
    %690 = vmatprep.subr.mxu0 0.0
    %691 = vmatpush1.msra.mxu0 0.0
    %692 = vmatprep.subr.mxu0 0.0
    %693 = vmatpush1.msra.mxu0 %v20
    %694 = vmatprep.subr.mxu0 0.0
    %695 = vmatpush1.msra.mxu0 %v19
    %696 = vmatprep.subr.mxu0 0.0
    %697 = vmatpush1.msra.mxu0 %v18
    %698 = vmatprep.subr.mxu0 0.0
    %699 = vmatpush1.msra.mxu0 %v17
    %700 = vmatprep.subr.mxu0 0.0
    %701 = vmatpush2.msra.mxu0 0.0
    %702 = vmatprep.subr.mxu0 0.0
    %703 = vmatpush2.msra.mxu0 0.0
    %704 = vmatprep.subr.mxu0 0.0
    %705 = vmatpush2.msra.mxu0 0.0
    %706 = vmatprep.subr.mxu0 0.0
    %707 = vmatpush2.msra.mxu0 0.0
    %708 = vmatprep.subr.mxu0 0.0
    %709 = vmatpush2.msra.mxu0 0.0
    %710 = vmatprep.subr.mxu0 0.0
    %711 = vmatpush2.msra.mxu0 0.0
    %712 = vmatprep.subr.mxu0 0.0
    %713 = vmatpush2.msra.mxu0 0.0
    %714 = vmatprep.subr.mxu0 0.0
    %715 = vmatpush2.msra.mxu0 0.0
    %716 = vmatprep.subr.mxu0 0.0
    %717 = vmatpush2.msra.mxu0 0.0
    %718 = vmatprep.subr.mxu0 0.0
    %719 = vmatpush2.msra.mxu0 0.0
    %720 = vmatprep.subr.mxu0 0.0
    %721 = vmatpush2.msra.mxu0 0.0
    %722 = vmatprep.subr.mxu0 0.0
    %723 = vmatpush2.msra.mxu0 0.0
    %724 = vmatprep.subr.mxu0 0.0
    %725 = vmatpush2.msra.mxu0 0.0
    %726 = vmatprep.subr.mxu0 0.0
    %727 = vmatpush2.msra.mxu0 0.0
    %728 = vmatprep.subr.mxu0 0.0
    %729 = vmatpush2.msra.mxu0 0.0
    %730 = vmatprep.subr.mxu0 0.0
    %731 = vmatpush2.msra.mxu0 0.0
    %732 = vmatprep.mubr.f32.mxu0 0.0
    %733 = vmatmul.mubr.f32.gmra.mxu0 %v666
    %v734 = vpop.f32.mrf.mxu0
    %v735 = vadd.f32 0.0, %v734
    %v736 = vpop.f32.mrf.mxu0
    %737 = vdwg.mxu0
    %v738 = vadd.f32 %v151, %v735
    %v739 = vxor.u32 %v738, 2147483648
    %v740 = vmul.f32 %v739, 1.442695
    %v741 = vpow.pop %v740
    %v742 = vadd.f32 %v741, 1.0
    %v743 = vrcp.pop %v742
    %v744 = vmul.f32 1.0, %v743
    %v745 = vtanh.pop %v738
    %v746 = vmul.f32 %v744, %v656
    %748 = vrot.lane.b32.xlu0 %v745, 32
    %v749 = vpop.permute.xlu0 %748
    %v751 = vmul.f32 %v744, %v749
    %753 = vrot.lane.b32.xlu0 %v751, 32
    %v754 = vpop.permute.xlu0 %753
    %v756 = vadd.f32 %v746, %v754
    %v757 = vtanh.pop %v756
    %759 = vrot.lane.b32.xlu0 %v757, 32
    %v760 = vpop.permute.xlu0 %759
    %v762 = vmul.f32 %v744, %v760
    %764 = vrot.lane.b32.xlu0 %v762, 64
    %v765 = vpop.permute.xlu0 %764
    %v766 = vsel %vm164, %v765, 0
    %768 = vmatprep.subr.mxu0 0.0
    %769 = vmatpush1.msra.mxu0 0.0
    %770 = vmatprep.subr.mxu0 0.0
    %771 = vmatpush1.msra.mxu0 0.0
    %772 = vmatprep.subr.mxu0 0.0
    %773 = vmatpush1.msra.mxu0 0.0
    %774 = vmatprep.subr.mxu0 0.0
    %775 = vmatpush1.msra.mxu0 0.0
    %776 = vmatprep.subr.mxu0 0.0
    %777 = vmatpush1.msra.mxu0 0.0
    %778 = vmatprep.subr.mxu0 0.0
    %779 = vmatpush1.msra.mxu0 0.0
    %780 = vmatprep.subr.mxu0 0.0
    %781 = vmatpush1.msra.mxu0 0.0
    %782 = vmatprep.subr.mxu0 0.0
    %783 = vmatpush1.msra.mxu0 0.0
    %784 = vmatprep.subr.mxu0 0.0
    %785 = vmatpush1.msra.mxu0 0.0
    %786 = vmatprep.subr.mxu0 0.0
    %787 = vmatpush1.msra.mxu0 0.0
    %788 = vmatprep.subr.mxu0 0.0
    %789 = vmatpush1.msra.mxu0 0.0
    %790 = vmatprep.subr.mxu0 0.0
    %791 = vmatpush1.msra.mxu0 0.0
    %792 = vmatprep.subr.mxu0 0.0
    %793 = vmatpush1.msra.mxu0 %v20
    %794 = vmatprep.subr.mxu0 0.0
    %795 = vmatpush1.msra.mxu0 %v19
    %796 = vmatprep.subr.mxu0 0.0
    %797 = vmatpush1.msra.mxu0 %v18
    %798 = vmatprep.subr.mxu0 0.0
    %799 = vmatpush1.msra.mxu0 %v17
    %800 = vmatprep.subr.mxu0 0.0
    %801 = vmatpush2.msra.mxu0 0.0
    %802 = vmatprep.subr.mxu0 0.0
    %803 = vmatpush2.msra.mxu0 0.0
    %804 = vmatprep.subr.mxu0 0.0
    %805 = vmatpush2.msra.mxu0 0.0
    %806 = vmatprep.subr.mxu0 0.0
    %807 = vmatpush2.msra.mxu0 0.0
    %808 = vmatprep.subr.mxu0 0.0
    %809 = vmatpush2.msra.mxu0 0.0
    %810 = vmatprep.subr.mxu0 0.0
    %811 = vmatpush2.msra.mxu0 0.0
    %812 = vmatprep.subr.mxu0 0.0
    %813 = vmatpush2.msra.mxu0 0.0
    %814 = vmatprep.subr.mxu0 0.0
    %815 = vmatpush2.msra.mxu0 0.0
    %816 = vmatprep.subr.mxu0 0.0
    %817 = vmatpush2.msra.mxu0 0.0
    %818 = vmatprep.subr.mxu0 0.0
    %819 = vmatpush2.msra.mxu0 0.0
    %820 = vmatprep.subr.mxu0 0.0
    %821 = vmatpush2.msra.mxu0 0.0
    %822 = vmatprep.subr.mxu0 0.0
    %823 = vmatpush2.msra.mxu0 0.0
    %824 = vmatprep.subr.mxu0 0.0
    %825 = vmatpush2.msra.mxu0 0.0
    %826 = vmatprep.subr.mxu0 0.0
    %827 = vmatpush2.msra.mxu0 0.0
    %828 = vmatprep.subr.mxu0 0.0
    %829 = vmatpush2.msra.mxu0 0.0
    %830 = vmatprep.subr.mxu0 0.0
    %831 = vmatpush2.msra.mxu0 0.0
    %832 = vmatprep.mubr.f32.mxu0 0.0
    %833 = vmatmul.mubr.f32.gmra.mxu0 %v766
    %v834 = vpop.f32.mrf.mxu0
    %v835 = vadd.f32 0.0, %v834
    %v836 = vpop.f32.mrf.mxu0
    %837 = vdwg.mxu0
    %v838 = vadd.f32 %v156, %v835
    %v839 = vxor.u32 %v838, 2147483648
    %v840 = vmul.f32 %v839, 1.442695
    %v841 = vpow.pop %v840
    %v842 = vadd.f32 %v841, 1.0
    %v843 = vrcp.pop %v842
    %v844 = vmul.f32 1.0, %v843
    %v845 = vtanh.pop %v838
    %v846 = vmul.f32 %v844, %v756
    %848 = vrot.lane.b32.xlu0 %v845, 32
    %v849 = vpop.permute.xlu0 %848
    %v851 = vmul.f32 %v844, %v849
    %853 = vrot.lane.b32.xlu0 %v851, 32
    %v854 = vpop.permute.xlu0 %853
    %v856 = vadd.f32 %v846, %v854
    %v857 = vtanh.pop %v856
    %859 = vrot.lane.b32.xlu0 %v857, 32
    %v860 = vpop.permute.xlu0 %859
    %v862 = vmul.f32 %v844, %v860
    %864 = vrot.lane.b32.xlu0 %v862, 64
    %v865 = vpop.permute.xlu0 %864
    %v866 = vsel %vm164, %v865, 0
    %868 = vmatprep.subr.mxu0 0.0
    %869 = vmatpush1.msra.mxu0 0.0
    %870 = vmatprep.subr.mxu0 0.0
    %871 = vmatpush1.msra.mxu0 0.0
    %872 = vmatprep.subr.mxu0 0.0
    %873 = vmatpush1.msra.mxu0 0.0
    %874 = vmatprep.subr.mxu0 0.0
    %875 = vmatpush1.msra.mxu0 0.0
    %876 = vmatprep.subr.mxu0 0.0
    %877 = vmatpush1.msra.mxu0 0.0
    %878 = vmatprep.subr.mxu0 0.0
    %879 = vmatpush1.msra.mxu0 0.0
    %880 = vmatprep.subr.mxu0 0.0
    %881 = vmatpush1.msra.mxu0 0.0
    %882 = vmatprep.subr.mxu0 0.0
    %883 = vmatpush1.msra.mxu0 0.0
    %884 = vmatprep.subr.mxu0 0.0
    %885 = vmatpush1.msra.mxu0 0.0
    %886 = vmatprep.subr.mxu0 0.0
    %887 = vmatpush1.msra.mxu0 0.0
    %888 = vmatprep.subr.mxu0 0.0
    %889 = vmatpush1.msra.mxu0 0.0
    %890 = vmatprep.subr.mxu0 0.0
    %891 = vmatpush1.msra.mxu0 0.0
    %892 = vmatprep.subr.mxu0 0.0
    %893 = vmatpush1.msra.mxu0 %v20
    %894 = vmatprep.subr.mxu0 0.0
    %895 = vmatpush1.msra.mxu0 %v19
    %896 = vmatprep.subr.mxu0 0.0
    %897 = vmatpush1.msra.mxu0 %v18
    %898 = vmatprep.subr.mxu0 0.0
    %899 = vmatpush1.msra.mxu0 %v17
    %900 = vmatprep.subr.mxu0 0.0
    %901 = vmatpush2.msra.mxu0 0.0
    %902 = vmatprep.subr.mxu0 0.0
    %903 = vmatpush2.msra.mxu0 0.0
    %904 = vmatprep.subr.mxu0 0.0
    %905 = vmatpush2.msra.mxu0 0.0
    %906 = vmatprep.subr.mxu0 0.0
    %907 = vmatpush2.msra.mxu0 0.0
    %908 = vmatprep.subr.mxu0 0.0
    %909 = vmatpush2.msra.mxu0 0.0
    %910 = vmatprep.subr.mxu0 0.0
    %911 = vmatpush2.msra.mxu0 0.0
    %912 = vmatprep.subr.mxu0 0.0
    %913 = vmatpush2.msra.mxu0 0.0
    %914 = vmatprep.subr.mxu0 0.0
    %915 = vmatpush2.msra.mxu0 0.0
    %916 = vmatprep.subr.mxu0 0.0
    %917 = vmatpush2.msra.mxu0 0.0
    %918 = vmatprep.subr.mxu0 0.0
    %919 = vmatpush2.msra.mxu0 0.0
    %920 = vmatprep.subr.mxu0 0.0
    %921 = vmatpush2.msra.mxu0 0.0
    %922 = vmatprep.subr.mxu0 0.0
    %923 = vmatpush2.msra.mxu0 0.0
    %924 = vmatprep.subr.mxu0 0.0
    %925 = vmatpush2.msra.mxu0 0.0
    %926 = vmatprep.subr.mxu0 0.0
    %927 = vmatpush2.msra.mxu0 0.0
    %928 = vmatprep.subr.mxu0 0.0
    %929 = vmatpush2.msra.mxu0 0.0
    %930 = vmatprep.subr.mxu0 0.0
    %931 = vmatpush2.msra.mxu0 0.0
    %932 = vmatprep.mubr.f32.mxu0 0.0
    %933 = vmatmul.mubr.f32.gmra.mxu0 %v866
    %v934 = vpop.f32.mrf.mxu0
    %v935 = vadd.f32 0.0, %v934
    %v936 = vpop.f32.mrf.mxu0
    %937 = vdwg.mxu0
    %v938 = vadd.f32 %v161, %v935
    %v939 = vxor.u32 %v938, 2147483648
    %v940 = vmul.f32 %v939, 1.442695
    %v941 = vpow.pop %v940
    %v942 = vadd.f32 %v941, 1.0
    %v943 = vrcp.pop %v942
    %v944 = vmul.f32 1.0, %v943
    %v945 = vtanh.pop %v938
    %v946 = vmul.f32 %v944, %v856
    %948 = vrot.lane.b32.xlu0 %v945, 32
    %v949 = vpop.permute.xlu0 %948
    %v951 = vmul.f32 %v944, %v949
    %953 = vrot.lane.b32.xlu0 %v951, 32
    %v954 = vpop.permute.xlu0 %953
    %v956 = vadd.f32 %v946, %v954
    %v957 = vtanh.pop %v956
    %959 = vrot.lane.b32.xlu0 %v957, 32
    %v960 = vpop.permute.xlu0 %959
    %v962 = vmul.f32 %v944, %v960
    %v963 = vld [vmem:[%s2 + $0x1] sm:$0x1]
    %v964 = vld [vmem:[%s2 + $0x8] sm:$0xff]
    %v965 = vlaneseq
    %v966 = vshrl.u32 %v965, 7
    %v967 = vsub.s32 0, %v966
    %v968 = vrot.slane %v963, %v967
    %970 = vrot.lane.b32.xlu0 %v968, 64
    %v971 = vpop.permute.xlu0 %970
    %v973 = vmul.f32 %v962, %v971
    %975 = vrot.lane.b32.xlu0 %v973, 64
    %v976 = vpop.permute.xlu0 %975
    %v978 = vsel %vm164, %v976, 0.0
    %979 = vadd.xlane.f32.xlu0 %v978
    %v980 = vpop.xlane.xlu0 %979
    %981 = vrot.lane.b32.xlu0 %v968, 96
    %v982 = vpop.permute.xlu0 %981
    %v984 = vmul.f32 %v964, %v982
    %vm985 = vcmask 64512
    %v986 = vsel %vm985, %v984, 0.0
    %987 = vadd.xlane.f32.xlu0 %v986
    %v988 = vpop.xlane.xlu0 %987
    %v989 = vadd.f32 %v980, %v988
    %v990 = vadd.f32 %v989, %v968
    %v991 = vxor.u32 %v990, 2147483648
    %v992 = vmul.f32 %v991, 1.442695
    %v993 = vpow.pop %v992
    %v994 = vadd.f32 %v993, 1.0
    %v995 = vrcp.pop %v994
    %v996 = vmul.f32 1.0, %v995
    %998 = vset.pattern.permute.xlu0 40
    %999 = vperm.xlu0 %998, %v996
    %v1000 = vpop.permute.xlu0 %999
    %1002 = vst [vmem:[#allocation2] sm:$0xff] %v1000
    // Predicated region
    $region14: #{tpu_custom_call.1} parent=1 // pred_check
      _
    $region15: #{tpu_custom_call.1} parent=1 // pred_check_branch
      %1004 = sbr.rel (0) target = $region17
    $region16: #{tpu_custom_call.1} parent=1 // pred_region
      %s1006 = ssub.s32 128, 128
      %1007 = vsyncadd [#allocation3], %s1006
      %s1009 = sshll.u32 [#allocation2], 4
      %s1010 = int_to_ptr.vmem [resolvable:$true] %s1009
      %1012 = dma.vmem_to_hbm [thread:$0]  %s1010, 128, %s3, [#allocation3]
    $region17: #{tpu_custom_call.1} parent=1 // pred_fallthru
      _
    // Predicated region
    $region18: #{tpu_custom_call.1} parent=1 // pred_check
      _
    $region19: #{tpu_custom_call.1} parent=1 // pred_check_branch
      %1014 = sbr.rel (0) target = $region21
    $region20: #{tpu_custom_call.1} parent=1 // pred_region
      %1015 = dma.done [#allocation3], 128
    $region21: #{tpu_custom_call.1} parent=1 // pred_fallthru
      _
    %1016 = vsyncpa [#allocation3], 1

</llo_original>
